<compile_context>
chip_gen: v5e
topology: v5e:2x2
jax: 0.10.0
libtpu: 0.0.40
codegen_flags: <defaults>
</compile_context>

<pallas_src>
import numpy as np

import jax
import jax.numpy as jnp
from jax import lax
from jax.experimental import pallas as pl
from jax.experimental.pallas import tpu as pltpu


def _round_up(x, m):
    return ((x + m - 1) // m) * m


# ---------------------------------------------------------------------------
# Fused kernel: one batch element per grid step; channels live on lanes.
# ---------------------------------------------------------------------------

def _cnn_encoder_kernel(xq_ref, w1_ref, s1_ref, t1_ref,
                        w2_ref, s2_ref, t2_ref,
                        weff_ref, bl_ref, o_ref):
    f32 = jnp.float32

    def bn_lrelu(y, s_ref, t_ref):
        # eval-mode BatchNorm (conv bias folded into the shift) + LeakyReLU(0.01)
        y = y * s_ref[...] + t_ref[...]
        return jnp.where(y > 0.0, y, f32(0.01) * y)

    def shift_down(v):            # row l gets row l-1's contents; zeros at l = 0
        return jnp.concatenate(
            [jnp.zeros((1, v.shape[1]), f32), v[:-1, :]], axis=0)

    def shift_up(v):              # row l gets row l+1's contents; zeros at l = last
        return jnp.concatenate(
            [v[1:, :], jnp.zeros((1, v.shape[1]), f32)], axis=0)

    xq = xq_ref[...]              # (M, 4*D); row m = [x[4m], x[4m+1], x[4m+2], x[4m+3]]
    m = xq.shape[0]
    d = xq.shape[1] // 4

    # ---- blk1: Conv1d(D, H, k=4, s=2, p=1) + BN + LeakyReLU, as ONE matmul ----
    # even outputs (pos 2m) read x[4m-1 .. 4m+2]; odd outputs (pos 2m+1) read x[4m+1 .. 4m+4]
    pe = jnp.concatenate([shift_down(xq[:, 3 * d:]), xq[:, :3 * d]], axis=1)   # (M, 4D)
    po = jnp.concatenate([xq[:, d:], shift_up(xq[:, :d])], axis=1)             # (M, 4D)
    h1 = bn_lrelu(
        jnp.dot(jnp.concatenate([pe, po], axis=0), w1_ref[...],
                preferred_element_type=f32),
        s1_ref, t1_ref)                                                        # (2M, H)
    h1e, h1o = h1[:m, :], h1[m:, :]        # conv1 outputs at even / odd positions

    # ---- blk2: Conv1d(H, 2H, k=4, s=2, p=1) + BN + LeakyReLU, as ONE matmul ----
    # output row l reads h1[2l-1], h1[2l], h1[2l+1], h1[2l+2]
    patches2 = jnp.concatenate(
        [shift_down(h1o), h1e, h1o, shift_up(h1e)], axis=1)                    # (M, 4H)
    h2 = bn_lrelu(
        jnp.dot(patches2, w2_ref[...], preferred_element_type=f32),
        s2_ref, t2_ref)                                                        # (M, 2H)

    # ---- AvgPool1d(4,2,1) + Flatten + Linear pre-folded into Weff[l, c, d_pad] ----
    out = bl_ref[...]                                                          # (1, Lpad)
    for l in range(m):                      # static unroll; M = T//4 is small here
        out = out + jnp.dot(h2[l:l + 1, :], weff_ref[l],
                            preferred_element_type=f32)
    o_ref[...] = out                        # lane-dense (1, 128*k) store


def cnn_encoder_fused(xq, w1p, s1, t1, w2p, s2, t2, weff, bl):
    b, m, d4 = xq.shape
    h = w1p.shape[1]
    c2 = w2p.shape[1]
    latent_pad = bl.shape[1]

    params = (w1p, s1, t1, w2p, s2, t2, weff, bl)
    param_bytes = sum(4 * int(np.prod(p.shape)) for p in params)
    io_block_bytes = 4 * (m * d4 + latent_pad)
    vmem_limit = int(min(48 * 2**20,
                         max(4 * 2**20, 8 * (param_bytes + 2 * io_block_bytes))))
    flops = 2 * b * (2 * m * d4 * h + m * 4 * h * c2 + m * c2 * latent_pad)
    bytes_accessed = 4 * b * (m * d4 + latent_pad) + param_bytes

    def full_spec(p):
        nd = p.ndim
        return pl.BlockSpec(p.shape, lambda i, _nd=nd: (0,) * _nd)

    out = pl.pallas_call(
        _cnn_encoder_kernel,
        out_shape=jax.ShapeDtypeStruct((b, 1, latent_pad), jnp.float32),
        grid=(b,),
        in_specs=[pl.BlockSpec((None, m, d4), lambda i: (i, 0, 0))]
                + [full_spec(p) for p in params],
        out_specs=pl.BlockSpec((None, 1, latent_pad), lambda i: (i, 0, 0)),
        compiler_params=pltpu.CompilerParams(
            dimension_semantics=("parallel",),          # 2x on v7x megacore
            vmem_limit_bytes=vmem_limit),
        cost_estimate=pl.CostEstimate(flops=flops, transcendentals=0,
                                      bytes_accessed=bytes_accessed),
    )(xq, *params)
    return out[:, 0, :]


# ---------------------------------------------------------------------------
# Module wrapper: parameters + kernel-friendly packing (done once at init)
# ---------------------------------------------------------------------------

class CNNEncoderPallas:
    """Pallas forward of CNNEncoder (eval mode, encode_obs_time=False)."""

    def __init__(self, dimension_in, latent_dim, hidden_units, timesteps, key):
        assert timesteps % 8 == 0 and timesteps >= 8, "need T % 8 == 0 (3 stride-2 stages)"
        H, D = hidden_units, dimension_in
        C2 = 2 * H
        L2 = timesteps // 4          # conv2 output length (kernel rows per batch elem)
        L3 = timesteps // 8          # pooled length
        f32 = jnp.float32
        eps = 1e-5
        ks = jax.random.split(key, 10)

        # --- raw parameters (mirror the torch module's tensors) ---
        self.w1 = 0.1 * jax.random.normal(ks[0], (H, D, 4), f32)
        self.b1 = 0.1 * jax.random.normal(ks[1], (H,), f32)
        self.g1 = 1.0 + 0.1 * jax.random.normal(ks[2], (H,), f32)
        self.beta1 = 0.1 * jax.random.normal(ks[3], (H,), f32)
        self.rm1, self.rv1 = jnp.zeros((H,), f32), jnp.ones((H,), f32)

        self.w2 = 0.1 * jax.random.normal(ks[4], (C2, H, 4), f32)
        self.b2 = 0.1 * jax.random.normal(ks[5], (C2,), f32)
        self.g2 = 1.0 + 0.1 * jax.random.normal(ks[6], (C2,), f32)
        self.beta2 = 0.1 * jax.random.normal(ks[7], (C2,), f32)
        self.rm2, self.rv2 = jnp.zeros((C2,), f32), jnp.ones((C2,), f32)

        self.w_lin = 0.1 * jax.random.normal(ks[8], (latent_dim, C2 * L3), f32)
        self.b_lin = 0.1 * jax.random.normal(ks[9], (latent_dim,), f32)

        # --- kernel-layout packing, done ONCE here (nothing rebuilt per call) ---
        scale1 = self.g1 / jnp.sqrt(self.rv1 + eps)
        scale2 = self.g2 / jnp.sqrt(self.rv2 + eps)
        shift1 = self.beta1 + (self.b1 - self.rm1) * scale1   # conv bias folded into BN shift
        shift2 = self.beta2 + (self.b2 - self.rm2) * scale2

        # Conv weights tap-packed along the contraction axis: W[k*Cin + c, o] = w[o, c, k]
        self.w1_packed = jnp.transpose(self.w1, (2, 1, 0)).reshape(4 * D, H)
        self.w2_packed = jnp.transpose(self.w2, (2, 1, 0)).reshape(4 * H, C2)
        self.s1 = scale1.reshape(1, H)
        self.t1 = shift1.reshape(1, H)
        self.s2 = scale2.reshape(1, C2)
        self.t2 = shift2.reshape(1, C2)

        # Fold AvgPool1d(4,2,1,count_include_pad=True) + channel-major Flatten + Linear:
        #   out[b, d] = b_lin[d] + sum_{l, c} h2[b, l, c] * Weff[l, c, d]
        # Latent padded to a lane-dense multiple of 128; sliced off outside the kernel.
        self.latent_dim = latent_dim
        self.latent_pad = _round_up(latent_dim, 128)
        w3 = np.asarray(self.w_lin).reshape(latent_dim, C2, L3)        # [d, c, t]
        weff = np.zeros((L2, C2, self.latent_pad), np.float32)
        for t in range(L3):
            for k in range(4):
                l = 2 * t + k - 1
                if 0 <= l < L2:
                    weff[l, :, :latent_dim] += 0.25 * np.transpose(w3[:, :, t])
        self.weff = jnp.asarray(weff)
        bl = np.zeros((1, self.latent_pad), np.float32)
        bl[0, :latent_dim] = np.asarray(self.b_lin)
        self.bl = jnp.asarray(bl)

        self.timesteps = timesteps

    def __call__(self, observed_data, observed_tp):
        # TODO(synk): encode_obs_time=True (concat observed_tp) not implemented.
        del observed_tp
        B, T, D = observed_data.shape
        assert T == self.timesteps
        # Free layout prep: group 4 consecutive timesteps per row so the kernel's
        # stride-2 tap gather is pure lane slicing (no strided loads, no sel matrices).
        xq = observed_data.astype(jnp.float32).reshape(B, T // 4, 4 * D)
        out = cnn_encoder_fused(xq, self.w1_packed, self.s1, self.t1,
                                self.w2_packed, self.s2, self.t2,
                                self.weff, self.bl)
        return out[:, :self.latent_dim]


# ---------------------------------------------------------------------------
# Pure-JAX reference (independent of the Pallas path)
# ---------------------------------------------------------------------------

def reference_forward(enc, observed_data):
    eps = 1e-5
    x = jnp.transpose(observed_data, (0, 2, 1)).astype(jnp.float32)   # NCL

    def blk(x, w, b, gamma, beta, rm, rv):
        y = lax.conv_general_dilated(
            x, w, window_strides=(2,), padding=[(1, 1)],
            dimension_numbers=("NCH", "OIH", "NCH"))
        y = y + b[None, :, None]
        scale = gamma / jnp.sqrt(rv + eps)
        y = (y - rm[None, :, None]) * scale[None, :, None] + beta[None, :, None]
        return jnp.where(y > 0, y, 0.01 * y)

    x = blk(x, enc.w1, enc.b1, enc.g1, enc.beta1, enc.rm1, enc.rv1)
    x = blk(x, enc.w2, enc.b2, enc.g2, enc.beta2, enc.rm2, enc.rv2)

    s = lax.reduce_window(x, 0.0, lax.add, (1, 1, 4), (1, 1, 2),
                          [(0, 0), (0, 0), (1, 1)])
    x = s / 4.0                                   # count_include_pad=True
    flat = x.reshape(x.shape[0], -1)              # channel-major flatten (torch)
    return flat @ enc.w_lin.T + enc.b_lin[None, :]


# ---------------------------------------------------------------------------

if __name__ == "__main__":
    B, T, D = 2, 16, 4          # batch, timesteps, dimension_in
    hidden_units, latent_dim = 8, 6

    key = jax.random.PRNGKey(0)
    k_data, k_param = jax.random.split(key)
    observed_data = jax.random.normal(k_data, (B, T, D), jnp.float32)
    observed_tp = jnp.linspace(0.0, 1.0, T)   # unused (encode_obs_time=False)

    enc = CNNEncoderPallas(D, latent_dim, hidden_units, timesteps=T, key=k_param)

    out = jax.block_until_ready(enc(observed_data, observed_tp))

    ref = reference_forward(enc, observed_data)
    assert out.shape == (B, latent_dim), out.shape
    assert jnp.allclose(out, ref, atol=2e-3, rtol=2e-3), (out, ref)

    print("KERNEL_OK")
</pallas_src>

<mosaic_0001>
module attributes {stable_mosaic.version = 11 : i64} {
  func.func @_cnn_encoder_kernel(%arg0: i32, %arg1: memref<1x4x16xf32, #tpu.memory_space<vmem>>, %arg2: memref<16x8xf32, #tpu.memory_space<vmem>>, %arg3: memref<1x8xf32, #tpu.memory_space<vmem>>, %arg4: memref<1x8xf32, #tpu.memory_space<vmem>>, %arg5: memref<32x16xf32, #tpu.memory_space<vmem>>, %arg6: memref<1x16xf32, #tpu.memory_space<vmem>>, %arg7: memref<1x16xf32, #tpu.memory_space<vmem>>, %arg8: memref<4x16x128xf32, #tpu.memory_space<vmem>>, %arg9: memref<1x128xf32, #tpu.memory_space<vmem>>, %arg10: memref<1x1x128xf32, #tpu.memory_space<vmem>>) attributes {dimension_semantics = [#tpu.dimension_semantics<parallel>], iteration_bounds = array<i64: 2>, scalar_prefetch = 0 : i64, scratch_operands = 0 : i64, tpu.core_type = #tpu.core_type<tc>, window_params = [{transform_indices = @transform_0, window_bounds = array<i64: 1, 4, 16>}, {pipeline_mode = #tpu.pipeline_mode<synchronous>, transform_indices = @transform_1, window_bounds = array<i64: 16, 8>}, {pipeline_mode = #tpu.pipeline_mode<synchronous>, transform_indices = @transform_2, window_bounds = array<i64: 1, 8>}, {pipeline_mode = #tpu.pipeline_mode<synchronous>, transform_indices = @transform_3, window_bounds = array<i64: 1, 8>}, {pipeline_mode = #tpu.pipeline_mode<synchronous>, transform_indices = @transform_4, window_bounds = array<i64: 32, 16>}, {pipeline_mode = #tpu.pipeline_mode<synchronous>, transform_indices = @transform_5, window_bounds = array<i64: 1, 16>}, {pipeline_mode = #tpu.pipeline_mode<synchronous>, transform_indices = @transform_6, window_bounds = array<i64: 1, 16>}, {pipeline_mode = #tpu.pipeline_mode<synchronous>, transform_indices = @transform_7, window_bounds = array<i64: 4, 16, 128>}, {pipeline_mode = #tpu.pipeline_mode<synchronous>, transform_indices = @transform_8, window_bounds = array<i64: 1, 128>}, {transform_indices = @transform_9, window_bounds = array<i64: 1, 1, 128>}]} {
    %c0 = arith.constant 0 : index
    %c0_0 = arith.constant 0 : index
    %c0_1 = arith.constant 0 : index
    %0 = vector.load %arg1[%c0, %c0_0, %c0_1] : memref<1x4x16xf32, #tpu.memory_space<vmem>>, vector<1x4x16xf32>
    %1 = vector.shape_cast %0 : vector<1x4x16xf32> to vector<4x16xf32>
    %2 = vector.extract_strided_slice %1 {offsets = [0, 12], sizes = [4, 4], strides = [1, 1]} : vector<4x16xf32> to vector<4x4xf32>
    %cst = arith.constant 0.000000e+00 : f32
    %3 = vector.broadcast %cst : f32 to vector<1x4xf32>
    %4 = vector.extract_strided_slice %2 {offsets = [0, 0], sizes = [3, 4], strides = [1, 1]} : vector<4x4xf32> to vector<3x4xf32>
    %5 = tpu.concatenate %3, %4 in 0 : vector<1x4xf32>, vector<3x4xf32> -> vector<4x4xf32>
    %6 = vector.extract_strided_slice %1 {offsets = [0, 0], sizes = [4, 12], strides = [1, 1]} : vector<4x16xf32> to vector<4x12xf32>
    %7 = tpu.concatenate %5, %6 in 1 : vector<4x4xf32>, vector<4x12xf32> -> vector<4x16xf32>
    %8 = vector.extract_strided_slice %1 {offsets = [0, 4], sizes = [4, 12], strides = [1, 1]} : vector<4x16xf32> to vector<4x12xf32>
    %9 = vector.extract_strided_slice %1 {offsets = [0, 0], sizes = [4, 4], strides = [1, 1]} : vector<4x16xf32> to vector<4x4xf32>
    %10 = vector.extract_strided_slice %9 {offsets = [1, 0], sizes = [3, 4], strides = [1, 1]} : vector<4x4xf32> to vector<3x4xf32>
    %cst_2 = arith.constant 0.000000e+00 : f32
    %11 = vector.broadcast %cst_2 : f32 to vector<1x4xf32>
    %12 = tpu.concatenate %10, %11 in 0 : vector<3x4xf32>, vector<1x4xf32> -> vector<4x4xf32>
    %13 = tpu.concatenate %8, %12 in 1 : vector<4x12xf32>, vector<4x4xf32> -> vector<4x16xf32>
    %14 = tpu.concatenate %7, %13 in 0 : vector<4x16xf32>, vector<4x16xf32> -> vector<8x16xf32>
    %c0_3 = arith.constant 0 : index
    %c0_4 = arith.constant 0 : index
    %15 = vector.load %arg2[%c0_3, %c0_4] : memref<16x8xf32, #tpu.memory_space<vmem>>, vector<16x8xf32>
    %cst_5 = arith.constant dense<0.000000e+00> : vector<8x8xf32>
    %16 = tpu.matmul %14, %15, %cst_5 {dimension_numbers = #tpu.dot_dimension_numbers<[1], [0], [0], [1], [0, 0, 1, 1], [], []>} : vector<8x16xf32>, vector<16x8xf32>, vector<8x8xf32> -> vector<8x8xf32>
    %c0_6 = arith.constant 0 : index
    %c0_7 = arith.constant 0 : index
    %17 = vector.load %arg3[%c0_6, %c0_7] : memref<1x8xf32, #tpu.memory_space<vmem>>, vector<1x8xf32>
    %18 = vector.broadcast %17 : vector<1x8xf32> to vector<8x8xf32>
    %19 = arith.mulf %16, %18 : vector<8x8xf32>
    %c0_8 = arith.constant 0 : index
    %c0_9 = arith.constant 0 : index
    %20 = vector.load %arg4[%c0_8, %c0_9] : memref<1x8xf32, #tpu.memory_space<vmem>>, vector<1x8xf32>
    %21 = vector.broadcast %20 : vector<1x8xf32> to vector<8x8xf32>
    %22 = arith.addf %19, %21 : vector<8x8xf32>
    %cst_10 = arith.constant 0.000000e+00 : f32
    %23 = vector.broadcast %cst_10 : f32 to vector<8x8xf32>
    %24 = arith.cmpf ogt, %22, %23 : vector<8x8xf32>
    %cst_11 = arith.constant 0.00999999977 : f32
    %25 = vector.broadcast %cst_11 : f32 to vector<8x8xf32>
    %26 = arith.mulf %25, %22 : vector<8x8xf32>
    %27 = arith.select %24, %22, %26 : vector<8x8xi1>, vector<8x8xf32>
    %28 = vector.extract_strided_slice %27 {offsets = [0, 0], sizes = [4, 8], strides = [1, 1]} : vector<8x8xf32> to vector<4x8xf32>
    %29 = vector.extract_strided_slice %27 {offsets = [4, 0], sizes = [4, 8], strides = [1, 1]} : vector<8x8xf32> to vector<4x8xf32>
    %cst_12 = arith.constant 0.000000e+00 : f32
    %30 = vector.broadcast %cst_12 : f32 to vector<1x8xf32>
    %31 = vector.extract_strided_slice %29 {offsets = [0, 0], sizes = [3, 8], strides = [1, 1]} : vector<4x8xf32> to vector<3x8xf32>
    %32 = tpu.concatenate %30, %31 in 0 : vector<1x8xf32>, vector<3x8xf32> -> vector<4x8xf32>
    %33 = vector.extract_strided_slice %28 {offsets = [1, 0], sizes = [3, 8], strides = [1, 1]} : vector<4x8xf32> to vector<3x8xf32>
    %cst_13 = arith.constant 0.000000e+00 : f32
    %34 = vector.broadcast %cst_13 : f32 to vector<1x8xf32>
    %35 = tpu.concatenate %33, %34 in 0 : vector<3x8xf32>, vector<1x8xf32> -> vector<4x8xf32>
    %36 = tpu.concatenate %32, %28, %29, %35 in 1 : vector<4x8xf32>, vector<4x8xf32>, vector<4x8xf32>, vector<4x8xf32> -> vector<4x32xf32>
    %c0_14 = arith.constant 0 : index
    %c0_15 = arith.constant 0 : index
    %37 = vector.load %arg5[%c0_14, %c0_15] : memref<32x16xf32, #tpu.memory_space<vmem>>, vector<32x16xf32>
    %cst_16 = arith.constant dense<0.000000e+00> : vector<4x16xf32>
    %38 = tpu.matmul %36, %37, %cst_16 {dimension_numbers = #tpu.dot_dimension_numbers<[1], [0], [0], [1], [0, 0, 1, 1], [], []>} : vector<4x32xf32>, vector<32x16xf32>, vector<4x16xf32> -> vector<4x16xf32>
    %c0_17 = arith.constant 0 : index
    %c0_18 = arith.constant 0 : index
    %39 = vector.load %arg6[%c0_17, %c0_18] : memref<1x16xf32, #tpu.memory_space<vmem>>, vector<1x16xf32>
    %40 = vector.broadcast %39 : vector<1x16xf32> to vector<4x16xf32>
    %41 = arith.mulf %38, %40 : vector<4x16xf32>
    %c0_19 = arith.constant 0 : index
    %c0_20 = arith.constant 0 : index
    %42 = vector.load %arg7[%c0_19, %c0_20] : memref<1x16xf32, #tpu.memory_space<vmem>>, vector<1x16xf32>
    %43 = vector.broadcast %42 : vector<1x16xf32> to vector<4x16xf32>
    %44 = arith.addf %41, %43 : vector<4x16xf32>
    %cst_21 = arith.constant 0.000000e+00 : f32
    %45 = vector.broadcast %cst_21 : f32 to vector<4x16xf32>
    %46 = arith.cmpf ogt, %44, %45 : vector<4x16xf32>
    %cst_22 = arith.constant 0.00999999977 : f32
    %47 = vector.broadcast %cst_22 : f32 to vector<4x16xf32>
    %48 = arith.mulf %47, %44 : vector<4x16xf32>
    %49 = arith.select %46, %44, %48 : vector<4x16xi1>, vector<4x16xf32>
    %c0_23 = arith.constant 0 : index
    %c0_24 = arith.constant 0 : index
    %50 = vector.load %arg9[%c0_23, %c0_24] : memref<1x128xf32, #tpu.memory_space<vmem>>, vector<1x128xf32>
    %51 = vector.extract_strided_slice %49 {offsets = [0, 0], sizes = [1, 16], strides = [1, 1]} : vector<4x16xf32> to vector<1x16xf32>
    %c0_25 = arith.constant 0 : index
    %c0_26 = arith.constant 0 : index
    %c0_27 = arith.constant 0 : index
    %52 = vector.load %arg8[%c0_25, %c0_26, %c0_27] : memref<4x16x128xf32, #tpu.memory_space<vmem>>, vector<1x16x128xf32>
    %53 = vector.shape_cast %52 : vector<1x16x128xf32> to vector<16x128xf32>
    %cst_28 = arith.constant dense<0.000000e+00> : vector<1x128xf32>
    %54 = tpu.matmul %51, %53, %cst_28 {dimension_numbers = #tpu.dot_dimension_numbers<[1], [0], [0], [1], [0, 0, 1, 1], [], []>} : vector<1x16xf32>, vector<16x128xf32>, vector<1x128xf32> -> vector<1x128xf32>
    %55 = arith.addf %50, %54 : vector<1x128xf32>
    %56 = vector.extract_strided_slice %49 {offsets = [1, 0], sizes = [1, 16], strides = [1, 1]} : vector<4x16xf32> to vector<1x16xf32>
    %c1 = arith.constant 1 : index
    %c0_29 = arith.constant 0 : index
    %c0_30 = arith.constant 0 : index
    %57 = vector.load %arg8[%c1, %c0_29, %c0_30] : memref<4x16x128xf32, #tpu.memory_space<vmem>>, vector<1x16x128xf32>
    %58 = vector.shape_cast %57 : vector<1x16x128xf32> to vector<16x128xf32>
    %cst_31 = arith.constant dense<0.000000e+00> : vector<1x128xf32>
    %59 = tpu.matmul %56, %58, %cst_31 {dimension_numbers = #tpu.dot_dimension_numbers<[1], [0], [0], [1], [0, 0, 1, 1], [], []>} : vector<1x16xf32>, vector<16x128xf32>, vector<1x128xf32> -> vector<1x128xf32>
    %60 = arith.addf %55, %59 : vector<1x128xf32>
    %61 = vector.extract_strided_slice %49 {offsets = [2, 0], sizes = [1, 16], strides = [1, 1]} : vector<4x16xf32> to vector<1x16xf32>
    %c2 = arith.constant 2 : index
    %c0_32 = arith.constant 0 : index
    %c0_33 = arith.constant 0 : index
    %62 = vector.load %arg8[%c2, %c0_32, %c0_33] : memref<4x16x128xf32, #tpu.memory_space<vmem>>, vector<1x16x128xf32>
    %63 = vector.shape_cast %62 : vector<1x16x128xf32> to vector<16x128xf32>
    %cst_34 = arith.constant dense<0.000000e+00> : vector<1x128xf32>
    %64 = tpu.matmul %61, %63, %cst_34 {dimension_numbers = #tpu.dot_dimension_numbers<[1], [0], [0], [1], [0, 0, 1, 1], [], []>} : vector<1x16xf32>, vector<16x128xf32>, vector<1x128xf32> -> vector<1x128xf32>
    %65 = arith.addf %60, %64 : vector<1x128xf32>
    %66 = vector.extract_strided_slice %49 {offsets = [3, 0], sizes = [1, 16], strides = [1, 1]} : vector<4x16xf32> to vector<1x16xf32>
    %c3 = arith.constant 3 : index
    %c0_35 = arith.constant 0 : index
    %c0_36 = arith.constant 0 : index
    %67 = vector.load %arg8[%c3, %c0_35, %c0_36] : memref<4x16x128xf32, #tpu.memory_space<vmem>>, vector<1x16x128xf32>
    %68 = vector.shape_cast %67 : vector<1x16x128xf32> to vector<16x128xf32>
    %cst_37 = arith.constant dense<0.000000e+00> : vector<1x128xf32>
    %69 = tpu.matmul %66, %68, %cst_37 {dimension_numbers = #tpu.dot_dimension_numbers<[1], [0], [0], [1], [0, 0, 1, 1], [], []>} : vector<1x16xf32>, vector<16x128xf32>, vector<1x128xf32> -> vector<1x128xf32>
    %70 = arith.addf %65, %69 : vector<1x128xf32>
    %c0_38 = arith.constant 0 : index
    %c0_39 = arith.constant 0 : index
    %c0_40 = arith.constant 0 : index
    %71 = vector.load %arg10[%c0_38, %c0_39, %c0_40] : memref<1x1x128xf32, #tpu.memory_space<vmem>>, vector<1x1x128xf32>
    %72 = vector.shape_cast %71 : vector<1x1x128xf32> to vector<1x128xf32>
    %73 = vector.shape_cast %70 : vector<1x128xf32> to vector<1x1x128xf32>
    tpu.vector_store %arg10[%c0_38, %c0_39, %c0_40], %73 {strides = array<i32>} : memref<1x1x128xf32, #tpu.memory_space<vmem>>, vector<1x1x128xf32>,
    return
  }
  func.func @transform_0(%arg0: i32) -> (i32, i32, i32) {
    %c0_i32 = arith.constant 0 : i32
    %c0_i32_0 = arith.constant 0 : i32
    %c0_i32_1 = arith.constant 0 : i32
    return %arg0, %c0_i32, %c0_i32_0 : i32, i32, i32
  }
  func.func @transform_1(%arg0: i32) -> (i32, i32) {
    %c0_i32 = arith.constant 0 : i32
    %c0_i32_0 = arith.constant 0 : i32
    %c0_i32_1 = arith.constant 0 : i32
    return %c0_i32, %c0_i32_0 : i32, i32
  }
  func.func @transform_2(%arg0: i32) -> (i32, i32) {
    %c0_i32 = arith.constant 0 : i32
    %c0_i32_0 = arith.constant 0 : i32
    %c0_i32_1 = arith.constant 0 : i32
    return %c0_i32, %c0_i32_0 : i32, i32
  }
  func.func @transform_3(%arg0: i32) -> (i32, i32) {
    %c0_i32 = arith.constant 0 : i32
    %c0_i32_0 = arith.constant 0 : i32
    %c0_i32_1 = arith.constant 0 : i32
    return %c0_i32, %c0_i32_0 : i32, i32
  }
  func.func @transform_4(%arg0: i32) -> (i32, i32) {
    %c0_i32 = arith.constant 0 : i32
    %c0_i32_0 = arith.constant 0 : i32
    %c0_i32_1 = arith.constant 0 : i32
    return %c0_i32, %c0_i32_0 : i32, i32
  }
  func.func @transform_5(%arg0: i32) -> (i32, i32) {
    %c0_i32 = arith.constant 0 : i32
    %c0_i32_0 = arith.constant 0 : i32
    %c0_i32_1 = arith.constant 0 : i32
    return %c0_i32, %c0_i32_0 : i32, i32
  }
  func.func @transform_6(%arg0: i32) -> (i32, i32) {
    %c0_i32 = arith.constant 0 : i32
    %c0_i32_0 = arith.constant 0 : i32
    %c0_i32_1 = arith.constant 0 : i32
    return %c0_i32, %c0_i32_0 : i32, i32
  }
  func.func @transform_7(%arg0: i32) -> (i32, i32, i32) {
    %c0_i32 = arith.constant 0 : i32
    %c0_i32_0 = arith.constant 0 : i32
    %c0_i32_1 = arith.constant 0 : i32
    %c0_i32_2 = arith.constant 0 : i32
    return %c0_i32, %c0_i32_0, %c0_i32_1 : i32, i32, i32
  }
  func.func @transform_8(%arg0: i32) -> (i32, i32) {
    %c0_i32 = arith.constant 0 : i32
    %c0_i32_0 = arith.constant 0 : i32
    %c0_i32_1 = arith.constant 0 : i32
    return %c0_i32, %c0_i32_0 : i32, i32
  }
  func.func @transform_9(%arg0: i32) -> (i32, i32, i32) {
    %c0_i32 = arith.constant 0 : i32
    %c0_i32_0 = arith.constant 0 : i32
    %c0_i32_1 = arith.constant 0 : i32
    return %arg0, %c0_i32, %c0_i32_0 : i32, i32, i32
  }
}

</mosaic_0001>

<llo_original>
// kernel: tpu_custom_call.1
$region0: #{tpu_custom_call.1}
  #allocation0 [shape = 'u32[]', space=smem, size = 0x4, offset = 0x4, fixed_abs, tag = 'smem constant byte address 0x4 - core index']
  #allocation1 [shape = 'u32[72,128]{1,0:T(1,128)}', space=vmem, size = 0x9000, scoped, tag = 'internal scratch']
  %s0 = inlined_call_operand.vmem [shape: f32[2,4,16], index: 0, kind: input, shape index: {}]
  %s1 = inlined_call_operand.vmem [shape: f32[16,8], index: 1, kind: input, shape index: {}]
  %s2 = inlined_call_operand.vmem [shape: f32[1,8], index: 2, kind: input, shape index: {}]
  %s3 = inlined_call_operand.vmem [shape: f32[1,8], index: 3, kind: input, shape index: {}]
  %s4 = inlined_call_operand.vmem [shape: f32[32,16], index: 4, kind: input, shape index: {}]
  %s5 = inlined_call_operand.vmem [shape: f32[1,16], index: 5, kind: input, shape index: {}]
  %s6 = inlined_call_operand.vmem [shape: f32[1,16], index: 6, kind: input, shape index: {}]
  %s7 = inlined_call_operand.vmem [shape: f32[4,16,128], index: 7, kind: input, shape index: {}]
  %s8 = inlined_call_operand.vmem [shape: f32[1,128], index: 8, kind: input, shape index: {}]
  %s9 = inlined_call_operand.hbm [shape: f32[2,1,128], index: 9, kind: output, shape index: {}]
  %s10 = sld [smem:[#allocation0]]
  $region69: #{tpu_custom_call.1} parent=0
    _
  %s12 = ssub.s32 1, %s10
  %s13 = scalar_select 0, %s12, %s10
  $region1: #{tpu_custom_call.1} parent=0
    #allocation2 [shape = 'u8[1024]{0}', space=vmem, size = 0x400, scoped, tag = 'output window, operand 0']
    #allocation3 [shape = 's32[2]{0}', space=sflag, size = 0x8, scoped, tag = 'scoped memory for tpu_custom_call.1']
    %14 = vsyncpa [#allocation3], 0
    %s15 = scalar_lea.sflag [#allocation3], 1
    %16 = vsyncpa %s15, 0
    loop: start=0, step=1, limit=4
    $region2: #{tpu_custom_call.1} parent=1 // loop_pre_header
      _
    $region3: #{tpu_custom_call.1} parent=1 // loop_header
      %s18 = sphi 0, %s22
      %p19 = scmp.ge.s32.totalorder %s18, 4
      %s28 = sphi 0, %s30
      %s31 = sphi 0, %s28
      %s32 = sphi 0, %s31
      %s48 = sphi 0, %s32
      %s52 = sphi 0, %s52
      %s54 = sphi 0, %s52
      %s55 = sphi 0, %s54
      %s69 = sphi 0, %s55
      %s73 = sphi 0, %s73
      %s75 = sphi 0, %s73
      %s76 = sphi 0, %s75
      %s90 = sphi 0, %s76
      %s94 = sphi 0, %s94
      %s96 = sphi 0, %s94
      %s97 = sphi 0, %s96
      %s111 = sphi 0, %s97
      %s115 = sphi 0, %s115
      %s117 = sphi 0, %s115
      %s118 = sphi 0, %s117
      %s132 = sphi 0, %s118
      %s136 = sphi 0, %s136
      %s138 = sphi 0, %s136
      %s139 = sphi 0, %s138
      %s153 = sphi 0, %s139
      %s157 = sphi 0, %s157
      %s159 = sphi 0, %s157
      %s160 = sphi 0, %s159
      %s174 = sphi 0, %s160
      %s178 = sphi 0, %s178
      %s180 = sphi 0, %s178
      %s181 = sphi 0, %s180
      %s195 = sphi 0, %s181
      %s199 = sphi 0, %s199
      %s201 = sphi 0, %s199
      %s202 = sphi 0, %s201
      %s216 = sphi 0, %s202
      %s222 = sphi 0, %s224
      %s225 = sphi 0, %s222
      %s226 = sphi 0, %s225
      %s242 = sphi 0, %s226
    $region4: #{tpu_custom_call.1} parent=1 // loop_header_branch
      %21 = sbr.rel (%p19) target = $region8
    $region5: #{tpu_custom_call.1} parent=1 // loop_body
      %s23 = ssub.s32 %s18, 1
      %s24 = ssub.s32 %s18, 2
      %s25 = sadd.s32 %s18, 1
      %s26 = ssub.s32 %s18, %s25
      %p27 = scmp.eq.s32.totalorder %s26, 0
      %s29 = sadd.s32 %s28, 1
      %s30 = scalar_select %p27, %s28, %s29
      %p33 = pneg %p27
      %p34 = scmp.eq.s32.totalorder %s18, 1
      %p35 = por %p33, %p34
      %p36 = scmp.ne.s32.totalorder %s28, %s31
      %p37 = scmp.eq.s32.totalorder %s18, 0
      %p38 = por %p36, %p37
      %p39 = scmp.ne.s32.totalorder %s28, %s31
      %p40 = scmp.eq.s32.totalorder %s23, 1
      %p41 = por %p39, %p40
      %p42 = scmp.ne.s32.totalorder %s31, %s32
      %p43 = scmp.eq.s32.totalorder %s23, 0
      %p44 = por %p42, %p43
      %p45 = scmp.ne.s32.totalorder %s31, %s32
      %p46 = scmp.eq.s32.totalorder %s24, 1
      %p47 = por %p45, %p46
      %p49 = scmp.ne.s32.totalorder %s32, %s48
      %p50 = scmp.eq.s32.totalorder %s24, 0
      %p51 = por %p49, %p50
      %s53 = sadd.s32 %s52, 1
      %p56 = scmp.eq.s32.totalorder %s18, 1
      %p57 = scmp.ne.s32.totalorder %s52, %s54
      %p58 = scmp.eq.s32.totalorder %s18, 0
      %p59 = por %p57, %p58
      %p60 = scmp.ne.s32.totalorder %s52, %s54
      %p61 = scmp.eq.s32.totalorder %s23, 1
      %p62 = por %p60, %p61
      %p63 = scmp.ne.s32.totalorder %s54, %s55
      %p64 = scmp.eq.s32.totalorder %s23, 0
      %p65 = por %p63, %p64
      %p66 = scmp.ne.s32.totalorder %s54, %s55
      %p67 = scmp.eq.s32.totalorder %s24, 1
      %p68 = por %p66, %p67
      %p70 = scmp.ne.s32.totalorder %s55, %s69
      %p71 = scmp.eq.s32.totalorder %s24, 0
      %p72 = por %p70, %p71
      %s74 = sadd.s32 %s73, 1
      %p77 = scmp.eq.s32.totalorder %s18, 1
      %p78 = scmp.ne.s32.totalorder %s73, %s75
      %p79 = scmp.eq.s32.totalorder %s18, 0
      %p80 = por %p78, %p79
      %p81 = scmp.ne.s32.totalorder %s73, %s75
      %p82 = scmp.eq.s32.totalorder %s23, 1
      %p83 = por %p81, %p82
      %p84 = scmp.ne.s32.totalorder %s75, %s76
      %p85 = scmp.eq.s32.totalorder %s23, 0
      %p86 = por %p84, %p85
      %p87 = scmp.ne.s32.totalorder %s75, %s76
      %p88 = scmp.eq.s32.totalorder %s24, 1
      %p89 = por %p87, %p88
      %p91 = scmp.ne.s32.totalorder %s76, %s90
      %p92 = scmp.eq.s32.totalorder %s24, 0
      %p93 = por %p91, %p92
      %s95 = sadd.s32 %s94, 1
      %p98 = scmp.eq.s32.totalorder %s18, 1
      %p99 = scmp.ne.s32.totalorder %s94, %s96
      %p100 = scmp.eq.s32.totalorder %s18, 0
      %p101 = por %p99, %p100
      %p102 = scmp.ne.s32.totalorder %s94, %s96
      %p103 = scmp.eq.s32.totalorder %s23, 1
      %p104 = por %p102, %p103
      %p105 = scmp.ne.s32.totalorder %s96, %s97
      %p106 = scmp.eq.s32.totalorder %s23, 0
      %p107 = por %p105, %p106
      %p108 = scmp.ne.s32.totalorder %s96, %s97
      %p109 = scmp.eq.s32.totalorder %s24, 1
      %p110 = por %p108, %p109
      %p112 = scmp.ne.s32.totalorder %s97, %s111
      %p113 = scmp.eq.s32.totalorder %s24, 0
      %p114 = por %p112, %p113
      %s116 = sadd.s32 %s115, 1
      %p119 = scmp.eq.s32.totalorder %s18, 1
      %p120 = scmp.ne.s32.totalorder %s115, %s117
      %p121 = scmp.eq.s32.totalorder %s18, 0
      %p122 = por %p120, %p121
      %p123 = scmp.ne.s32.totalorder %s115, %s117
      %p124 = scmp.eq.s32.totalorder %s23, 1
      %p125 = por %p123, %p124
      %p126 = scmp.ne.s32.totalorder %s117, %s118
      %p127 = scmp.eq.s32.totalorder %s23, 0
      %p128 = por %p126, %p127
      %p129 = scmp.ne.s32.totalorder %s117, %s118
      %p130 = scmp.eq.s32.totalorder %s24, 1
      %p131 = por %p129, %p130
      %p133 = scmp.ne.s32.totalorder %s118, %s132
      %p134 = scmp.eq.s32.totalorder %s24, 0
      %p135 = por %p133, %p134
      %s137 = sadd.s32 %s136, 1
      %p140 = scmp.eq.s32.totalorder %s18, 1
      %p141 = scmp.ne.s32.totalorder %s136, %s138
      %p142 = scmp.eq.s32.totalorder %s18, 0
      %p143 = por %p141, %p142
      %p144 = scmp.ne.s32.totalorder %s136, %s138
      %p145 = scmp.eq.s32.totalorder %s23, 1
      %p146 = por %p144, %p145
      %p147 = scmp.ne.s32.totalorder %s138, %s139
      %p148 = scmp.eq.s32.totalorder %s23, 0
      %p149 = por %p147, %p148
      %p150 = scmp.ne.s32.totalorder %s138, %s139
      %p151 = scmp.eq.s32.totalorder %s24, 1
      %p152 = por %p150, %p151
      %p154 = scmp.ne.s32.totalorder %s139, %s153
      %p155 = scmp.eq.s32.totalorder %s24, 0
      %p156 = por %p154, %p155
      %s158 = sadd.s32 %s157, 1
      %p161 = scmp.eq.s32.totalorder %s18, 1
      %p162 = scmp.ne.s32.totalorder %s157, %s159
      %p163 = scmp.eq.s32.totalorder %s18, 0
      %p164 = por %p162, %p163
      %p165 = scmp.ne.s32.totalorder %s157, %s159
      %p166 = scmp.eq.s32.totalorder %s23, 1
      %p167 = por %p165, %p166
      %p168 = scmp.ne.s32.totalorder %s159, %s160
      %p169 = scmp.eq.s32.totalorder %s23, 0
      %p170 = por %p168, %p169
      %p171 = scmp.ne.s32.totalorder %s159, %s160
      %p172 = scmp.eq.s32.totalorder %s24, 1
      %p173 = por %p171, %p172
      %p175 = scmp.ne.s32.totalorder %s160, %s174
      %p176 = scmp.eq.s32.totalorder %s24, 0
      %p177 = por %p175, %p176
      %s179 = sadd.s32 %s178, 1
      %p182 = scmp.eq.s32.totalorder %s18, 1
      %p183 = scmp.ne.s32.totalorder %s178, %s180
      %p184 = scmp.eq.s32.totalorder %s18, 0
      %p185 = por %p183, %p184
      %p186 = scmp.ne.s32.totalorder %s178, %s180
      %p187 = scmp.eq.s32.totalorder %s23, 1
      %p188 = por %p186, %p187
      %p189 = scmp.ne.s32.totalorder %s180, %s181
      %p190 = scmp.eq.s32.totalorder %s23, 0
      %p191 = por %p189, %p190
      %p192 = scmp.ne.s32.totalorder %s180, %s181
      %p193 = scmp.eq.s32.totalorder %s24, 1
      %p194 = por %p192, %p193
      %p196 = scmp.ne.s32.totalorder %s181, %s195
      %p197 = scmp.eq.s32.totalorder %s24, 0
      %p198 = por %p196, %p197
      %s200 = sadd.s32 %s199, 1
      %p203 = scmp.eq.s32.totalorder %s18, 1
      %p204 = scmp.ne.s32.totalorder %s199, %s201
      %p205 = scmp.eq.s32.totalorder %s18, 0
      %p206 = por %p204, %p205
      %p207 = scmp.ne.s32.totalorder %s199, %s201
      %p208 = scmp.eq.s32.totalorder %s23, 1
      %p209 = por %p207, %p208
      %p210 = scmp.ne.s32.totalorder %s201, %s202
      %p211 = scmp.eq.s32.totalorder %s23, 0
      %p212 = por %p210, %p211
      %p213 = scmp.ne.s32.totalorder %s201, %s202
      %p214 = scmp.eq.s32.totalorder %s24, 1
      %p215 = por %p213, %p214
      %p217 = scmp.ne.s32.totalorder %s202, %s216
      %p218 = scmp.eq.s32.totalorder %s24, 0
      %p219 = por %p217, %p218
      %s220 = ssub.s32 %s18, %s25
      %p221 = scmp.eq.s32.totalorder %s220, 0
      %s223 = sadd.s32 %s222, 1
      %s224 = scalar_select %p221, %s222, %s223
      %p227 = pneg %p221
      %p228 = scmp.eq.s32.totalorder %s18, 1
      %p229 = por %p227, %p228
      %p230 = scmp.ne.s32.totalorder %s222, %s225
      %p231 = scmp.eq.s32.totalorder %s18, 0
      %p232 = por %p230, %p231
      %p233 = scmp.ne.s32.totalorder %s222, %s225
      %p234 = scmp.eq.s32.totalorder %s23, 1
      %p235 = por %p233, %p234
      %p236 = scmp.ne.s32.totalorder %s225, %s226
      %p237 = scmp.eq.s32.totalorder %s23, 0
      %p238 = por %p236, %p237
      %p239 = scmp.ne.s32.totalorder %s225, %s226
      %p240 = scmp.eq.s32.totalorder %s24, 1
      %p241 = por %p239, %p240
      %p243 = scmp.ne.s32.totalorder %s226, %s242
      %p244 = scmp.eq.s32.totalorder %s24, 0
      %p245 = por %p243, %p244
      %p246 = scmp.le.s32.totalorder 1, %s18
      %p247 = scmp.lt.s32.totalorder %s18, 3
      %p248 = pnand %p246, %p247
      %p249 = pneg %p248
      // Predicated region
      $region9: #{tpu_custom_call.1} parent=5 // pred_check
        _
      $region10: #{tpu_custom_call.1} parent=5 // pred_check_branch
        %251 = sbr.rel (%p248) target = $region12
      $region11: #{tpu_custom_call.1} parent=5 // pred_region
        %s252 = ssub.s32 %s18, 1
        // Predicated region
        $region13: #{tpu_custom_call.1} parent=11 // pred_check
          %p253 = pneg %p65
        $region14: #{tpu_custom_call.1} parent=11 // pred_check_branch
          %255 = sbr.rel (%p253) target = $region16
        $region15: #{tpu_custom_call.1} parent=11 // pred_region
          _
        $region16: #{tpu_custom_call.1} parent=11 // pred_fallthru
          _
        // Predicated region
        $region17: #{tpu_custom_call.1} parent=11 // pred_check
          %p256 = pneg %p86
        $region18: #{tpu_custom_call.1} parent=11 // pred_check_branch
          %258 = sbr.rel (%p256) target = $region20
        $region19: #{tpu_custom_call.1} parent=11 // pred_region
          _
        $region20: #{tpu_custom_call.1} parent=11 // pred_fallthru
          _
        // Predicated region
        $region21: #{tpu_custom_call.1} parent=11 // pred_check
          %p259 = pneg %p107
        $region22: #{tpu_custom_call.1} parent=11 // pred_check_branch
          %261 = sbr.rel (%p259) target = $region24
        $region23: #{tpu_custom_call.1} parent=11 // pred_region
          _
        $region24: #{tpu_custom_call.1} parent=11 // pred_fallthru
          _
        // Predicated region
        $region25: #{tpu_custom_call.1} parent=11 // pred_check
          %p262 = pneg %p128
        $region26: #{tpu_custom_call.1} parent=11 // pred_check_branch
          %264 = sbr.rel (%p262) target = $region28
        $region27: #{tpu_custom_call.1} parent=11 // pred_region
          _
        $region28: #{tpu_custom_call.1} parent=11 // pred_fallthru
          _
        // Predicated region
        $region29: #{tpu_custom_call.1} parent=11 // pred_check
          %p265 = pneg %p149
        $region30: #{tpu_custom_call.1} parent=11 // pred_check_branch
          %267 = sbr.rel (%p265) target = $region32
        $region31: #{tpu_custom_call.1} parent=11 // pred_region
          _
        $region32: #{tpu_custom_call.1} parent=11 // pred_fallthru
          _
        // Predicated region
        $region33: #{tpu_custom_call.1} parent=11 // pred_check
          %p268 = pneg %p170
        $region34: #{tpu_custom_call.1} parent=11 // pred_check_branch
          %270 = sbr.rel (%p268) target = $region36
        $region35: #{tpu_custom_call.1} parent=11 // pred_region
          _
        $region36: #{tpu_custom_call.1} parent=11 // pred_fallthru
          _
        // Predicated region
        $region37: #{tpu_custom_call.1} parent=11 // pred_check
          %p271 = pneg %p191
        $region38: #{tpu_custom_call.1} parent=11 // pred_check_branch
          %273 = sbr.rel (%p271) target = $region40
        $region39: #{tpu_custom_call.1} parent=11 // pred_region
          _
        $region40: #{tpu_custom_call.1} parent=11 // pred_fallthru
          _
        // Predicated region
        $region41: #{tpu_custom_call.1} parent=11 // pred_check
          %p274 = pneg %p212
        $region42: #{tpu_custom_call.1} parent=11 // pred_check_branch
          %276 = sbr.rel (%p274) target = $region44
        $region43: #{tpu_custom_call.1} parent=11 // pred_region
          _
        $region44: #{tpu_custom_call.1} parent=11 // pred_fallthru
          _
      $region12: #{tpu_custom_call.1} parent=5 // pred_fallthru
        _
      %p277 = scmp.lt.s32.totalorder %s18, 2
      // Predicated region
      $region45: #{tpu_custom_call.1} parent=5 // pred_check
        %p278 = pneg %p277
      $region46: #{tpu_custom_call.1} parent=5 // pred_check_branch
        %280 = sbr.rel (%p278) target = $region48
      $region47: #{tpu_custom_call.1} parent=5 // pred_region
        // Predicated region
        $region49: #{tpu_custom_call.1} parent=47 // pred_check
          %p281 = pneg %p38
        $region50: #{tpu_custom_call.1} parent=47 // pred_check_branch
          %283 = sbr.rel (%p281) target = $region52
        $region51: #{tpu_custom_call.1} parent=47 // pred_region
          %p284 = scmp.lt.s32.totalorder %s18, 1
          %s285 = scalar_select %p284, %s18, 1
          %s286 = smul.addr %s285, 4
          %s287 = scalar_lea.vmem %s0, %s286
        $region52: #{tpu_custom_call.1} parent=47 // pred_fallthru
          _
      $region48: #{tpu_custom_call.1} parent=5 // pred_fallthru
        _
      %p288 = scmp.le.s32.totalorder 1, %s18
      %p289 = scmp.lt.s32.totalorder %s18, 3
      %p290 = pnand %p288, %p289
      %p291 = pneg %p290
      // Predicated region
      $region53: #{tpu_custom_call.1} parent=5 // pred_check
        _
      $region54: #{tpu_custom_call.1} parent=5 // pred_check_branch
        %293 = sbr.rel (%p290) target = $region56
      $region55: #{tpu_custom_call.1} parent=5 // pred_region
        %s294 = ssub.s32 %s18, 1
        %p295 = scmp.lt.s32.totalorder %s23, 1
        %s296 = scalar_select %p295, %s23, 1
        %s297 = smul.addr %s296, 4
        %s298 = scalar_lea.vmem %s0, %s297
        %p299 = pneg %p44
        %p300 = pneg %p41
        %p301 = pneg %p65
        %p302 = pneg %p62
        %p303 = pneg %p86
        %p304 = pneg %p83
        %p305 = pneg %p107
        %p306 = pneg %p104
        %p307 = pneg %p128
        %p308 = pneg %p125
        %p309 = pneg %p149
        %p310 = pneg %p146
        %p311 = pneg %p170
        %p312 = pneg %p167
        %p313 = pneg %p191
        %p314 = pneg %p188
        %p315 = pneg %p212
        %p316 = pneg %p209
        %p317 = pneg %p238
        %p318 = pneg %p235
        %s319 = sand.u32 %s225, 1
        %s320 = scalar_lea.sflag [#allocation3], %s319
        %s321 = sand.u32 %s225, 1
        %s322 = scalar_lea.vmem [#allocation2], %s321
        %p323 = scmp.lt.s32.totalorder %s23, 1
        %s324 = scalar_select %p323, %s23, 1
        %s325 = smul.addr %s324, 4
        %s326 = scalar_lea.vmem %s0, %s325
        %v327 = vld [vmem:[%s326] sm:$0xf]
        %v329 = vrot.slane %v327, 7
        %330 = vrot.lane.b32.xlu0 %v329, 116
        %v331 = vpop.permute.xlu0 %330
        %vm333 = vcmask 1040384
        %v334 = vsel %vm333, 0.0, %v331
        %335 = vrot.lane.b32.xlu0 %v327, 4
        %v336 = vpop.permute.xlu0 %335
        %vm338 = vcmask 31744
        %v339 = vsel %vm338, %v334, %v336
        %v340 = vrot.slane %v327, 1
        %vm342 = vcmask 1042432
        %v343 = vsel %vm342, %v340, 0.0
        %344 = vrot.lane.b32.xlu0 %v327, 124
        %v345 = vpop.permute.xlu0 %344
        %348 = vrot.lane.b32.xlu0 %v343, 12
        %v349 = vpop.permute.xlu0 %348
        %vm351 = vcmask 97280
        %v352 = vsel %vm351, %v345, %v349
        %v354 = vrot.slane %v352, 4
        %vm356 = vcmask 1043456
        %v357 = vsel %vm356, %v339, %v354
        %v358 = vld [vmem:[%s1] sm:$0xff]
        %v359 = vld [vmem:[%s1 + $0x8] sm:$0xff]
        %vm360 = vcmask 130048
        %v362 = vsel %vm360, %v357, 0
        %364 = vmatpush.msra.mxu0 0.0
        %365 = vmatpush.msra.mxu0 0.0
        %366 = vmatpush.msra.mxu0 0.0
        %367 = vmatpush.msra.mxu0 0.0
        %368 = vmatpush.msra.mxu0 0.0
        %369 = vmatpush.msra.mxu0 0.0
        %370 = vmatpush.msra.mxu0 0.0
        %371 = vmatpush.msra.mxu0 0.0
        %372 = vmatpush.msra.mxu0 0.0
        %373 = vmatpush.msra.mxu0 0.0
        %374 = vmatpush.msra.mxu0 0.0
        %375 = vmatpush.msra.mxu0 0.0
        %376 = vmatpush.msra.mxu0 0.0
        %377 = vmatpush.msra.mxu0 0.0
        %378 = vmatpush.msra.mxu0 %v359
        %379 = vmatpush.msra.mxu0 %v358
        %380 = vmatmul.f32.gmra.mxu0 %v362
        %v381 = vpop.f32.mrf.mxu0
        %v382 = vadd.f32 0.0, %v381
        %383 = vdwg.mxu0
        %v384 = vld [vmem:[%s2] sm:$0x1]
        %v386 = vperm.slane %v384, 0
        %v388 = vmul.f32 %v382, %v386
        %v389 = vld [vmem:[%s3] sm:$0x1]
        %v391 = vperm.slane %v389, 0
        %v393 = vadd.f32 %v388, %v391
        %vm394 = vcmp.gt.f32.partialorder %v393, 0.0
        %v395 = vmul.f32 %v393, 0.01
        %v396 = vsel %vm394, %v393, %v395
        %v398 = vrot.slane %v396, 3
        %v400 = vsel %vm333, 0.0, %v398
        %v401 = vrot.slane %v396, 1
        %v403 = vsel %vm342, %v401, 0.0
        %404 = vrot.lane.b32.xlu0 %v396, 8
        %v405 = vpop.permute.xlu0 %404
        %v407 = vrot.slane %v396, 4
        %408 = vrot.lane.b32.xlu0 %v407, 16
        %v409 = vpop.permute.xlu0 %408
        %412 = vrot.lane.b32.xlu0 %v403, 24
        %v413 = vpop.permute.xlu0 %412
        %vm415 = vcmask 64512
        %v416 = vsel %vm415, %v400, %v405
        %v417 = vsel %vm360, %v416, %v409
        %vm418 = vcmask 195584
        %v419 = vsel %vm418, %v417, %v413
        %v420 = vld [vmem:[%s4] sm:$0xff]
        %v421 = vld [vmem:[%s4 + $0x8] sm:$0xff]
        %v422 = vld [vmem:[%s4 + $0x10] sm:$0xff]
        %v423 = vld [vmem:[%s4 + $0x18] sm:$0xff]
        %vm424 = vcmask 261120
        %v426 = vsel %vm424, %v419, 0
        %428 = vmatpush.msra.mxu0 0.0
        %429 = vmatpush.msra.mxu0 0.0
        %430 = vmatpush.msra.mxu0 0.0
        %431 = vmatpush.msra.mxu0 0.0
        %432 = vmatpush.msra.mxu0 0.0
        %433 = vmatpush.msra.mxu0 0.0
        %434 = vmatpush.msra.mxu0 0.0
        %435 = vmatpush.msra.mxu0 0.0
        %436 = vmatpush.msra.mxu0 0.0
        %437 = vmatpush.msra.mxu0 0.0
        %438 = vmatpush.msra.mxu0 0.0
        %439 = vmatpush.msra.mxu0 0.0
        %440 = vmatpush.msra.mxu0 %v423
        %441 = vmatpush.msra.mxu0 %v422
        %442 = vmatpush.msra.mxu0 %v421
        %443 = vmatpush.msra.mxu0 %v420
        %444 = vmatmul.f32.gmra.mxu0 %v426
        %v445 = vpop.f32.mrf.mxu0
        %v446 = vadd.f32 0.0, %v445
        %447 = vdwg.mxu0
        %v448 = vld [vmem:[%s5] sm:$0x1]
        %v450 = vperm.slane %v448, 0
        %v452 = vmul.f32 %v446, %v450
        %v453 = vld [vmem:[%s6] sm:$0x1]
        %v455 = vperm.slane %v453, 0
        %v457 = vadd.f32 %v452, %v455
        %vm458 = vcmp.gt.f32.partialorder %v457, 0.0
        %v459 = vmul.f32 %v457, 0.01
        %v460 = vsel %vm458, %v457, %v459
        %v461 = vld [vmem:[%s8] sm:$0x1]
        %v462 = vld [vmem:[%s7] sm:$0xff]
        %v463 = vld [vmem:[%s7 + $0x8] sm:$0xff]
        %v465 = vsel %vm360, %v460, 0
        %467 = vmatpush.msra.mxu0 0.0
        %468 = vmatpush.msra.mxu0 0.0
        %469 = vmatpush.msra.mxu0 0.0
        %470 = vmatpush.msra.mxu0 0.0
        %471 = vmatpush.msra.mxu0 0.0
        %472 = vmatpush.msra.mxu0 0.0
        %473 = vmatpush.msra.mxu0 0.0
        %474 = vmatpush.msra.mxu0 0.0
        %475 = vmatpush.msra.mxu0 0.0
        %476 = vmatpush.msra.mxu0 0.0
        %477 = vmatpush.msra.mxu0 0.0
        %478 = vmatpush.msra.mxu0 0.0
        %479 = vmatpush.msra.mxu0 0.0
        %480 = vmatpush.msra.mxu0 0.0
        %481 = vmatpush.msra.mxu0 %v463
        %482 = vmatpush.msra.mxu0 %v462
        %483 = vmatmul.f32.gmra.mxu0 %v465
        %v484 = vpop.f32.mrf.mxu0
        %v485 = vadd.f32 0.0, %v484
        %486 = vdwg.mxu0
        %v487 = vadd.f32 %v461, %v485
        %s488 = scalar_lea.vmem %s7, 16
        %v489 = vld [vmem:[%s488] sm:$0xff]
        %v490 = vld [vmem:[%s488 + $0x8] sm:$0xff]
        %v491 = vrot.slane %v460, 1
        %v492 = vsel %vm360, %v491, 0
        %494 = vmatpush.msra.mxu0 0.0
        %495 = vmatpush.msra.mxu0 0.0
        %496 = vmatpush.msra.mxu0 0.0
        %497 = vmatpush.msra.mxu0 0.0
        %498 = vmatpush.msra.mxu0 0.0
        %499 = vmatpush.msra.mxu0 0.0
        %500 = vmatpush.msra.mxu0 0.0
        %501 = vmatpush.msra.mxu0 0.0
        %502 = vmatpush.msra.mxu0 0.0
        %503 = vmatpush.msra.mxu0 0.0
        %504 = vmatpush.msra.mxu0 0.0
        %505 = vmatpush.msra.mxu0 0.0
        %506 = vmatpush.msra.mxu0 0.0
        %507 = vmatpush.msra.mxu0 0.0
        %508 = vmatpush.msra.mxu0 %v490
        %509 = vmatpush.msra.mxu0 %v489
        %510 = vmatmul.f32.gmra.mxu0 %v492
        %v511 = vpop.f32.mrf.mxu0
        %v512 = vadd.f32 0.0, %v511
        %513 = vdwg.mxu0
        %v514 = vadd.f32 %v487, %v512
        %s515 = scalar_lea.vmem %s7, 32
        %v516 = vld [vmem:[%s515] sm:$0xff]
        %v517 = vld [vmem:[%s515 + $0x8] sm:$0xff]
        %v518 = vrot.slane %v460, 2
        %v519 = vsel %vm360, %v518, 0
        %521 = vmatpush.msra.mxu0 0.0
        %522 = vmatpush.msra.mxu0 0.0
        %523 = vmatpush.msra.mxu0 0.0
        %524 = vmatpush.msra.mxu0 0.0
        %525 = vmatpush.msra.mxu0 0.0
        %526 = vmatpush.msra.mxu0 0.0
        %527 = vmatpush.msra.mxu0 0.0
        %528 = vmatpush.msra.mxu0 0.0
        %529 = vmatpush.msra.mxu0 0.0
        %530 = vmatpush.msra.mxu0 0.0
        %531 = vmatpush.msra.mxu0 0.0
        %532 = vmatpush.msra.mxu0 0.0
        %533 = vmatpush.msra.mxu0 0.0
        %534 = vmatpush.msra.mxu0 0.0
        %535 = vmatpush.msra.mxu0 %v517
        %536 = vmatpush.msra.mxu0 %v516
        %537 = vmatmul.f32.gmra.mxu0 %v519
        %v538 = vpop.f32.mrf.mxu0
        %v539 = vadd.f32 0.0, %v538
        %540 = vdwg.mxu0
        %v541 = vadd.f32 %v514, %v539
        %s542 = scalar_lea.vmem %s7, 48
        %v543 = vld [vmem:[%s542] sm:$0xff]
        %v544 = vld [vmem:[%s542 + $0x8] sm:$0xff]
        %v545 = vrot.slane %v460, 3
        %v546 = vsel %vm360, %v545, 0
        %548 = vmatpush.msra.mxu0 0.0
        %549 = vmatpush.msra.mxu0 0.0
        %550 = vmatpush.msra.mxu0 0.0
        %551 = vmatpush.msra.mxu0 0.0
        %552 = vmatpush.msra.mxu0 0.0
        %553 = vmatpush.msra.mxu0 0.0
        %554 = vmatpush.msra.mxu0 0.0
        %555 = vmatpush.msra.mxu0 0.0
        %556 = vmatpush.msra.mxu0 0.0
        %557 = vmatpush.msra.mxu0 0.0
        %558 = vmatpush.msra.mxu0 0.0
        %559 = vmatpush.msra.mxu0 0.0
        %560 = vmatpush.msra.mxu0 0.0
        %561 = vmatpush.msra.mxu0 0.0
        %562 = vmatpush.msra.mxu0 %v544
        %563 = vmatpush.msra.mxu0 %v543
        %564 = vmatmul.f32.gmra.mxu0 %v546
        %v565 = vpop.f32.mrf.mxu0
        %v566 = vadd.f32 0.0, %v565
        %567 = vdwg.mxu0
        %v568 = vadd.f32 %v541, %v566
        %569 = vst [vmem:[%s322] sm:$0x1] %v568
        %s570 = sand.u32 %s225, 1
        %s571 = scalar_lea.sflag [#allocation3], %s570
        %s572 = sand.u32 %s225, 1
        %s573 = scalar_lea.vmem [#allocation2], %s572
        // Predicated region
        $region57: #{tpu_custom_call.1} parent=55 // pred_check
          %p574 = pneg %p235
        $region58: #{tpu_custom_call.1} parent=55 // pred_check_branch
          %576 = sbr.rel (%p574) target = $region60
        $region59: #{tpu_custom_call.1} parent=55 // pred_region
          %578 = vsyncadd %s571, 0
          %s579 = scalar_lea.hbm %s9, %s23
          %s581 = sshll.u32 %s573, 4
          %s582 = int_to_ptr.vmem [resolvable:$true] %s581
          %s583 = sshll.u32 %s579, 4
          %s584 = int_to_ptr.hbm [resolvable:$true] %s583
          %586 = dma.vmem_to_hbm [thread:$0]  %s582, 16, %s584, %s571
        $region60: #{tpu_custom_call.1} parent=55 // pred_fallthru
          _
      $region56: #{tpu_custom_call.1} parent=5 // pred_fallthru
        _
      %p587 = scmp.le.s32.totalorder 2, %s18
      // Predicated region
      $region61: #{tpu_custom_call.1} parent=5 // pred_check
        %p588 = pneg %p587
      $region62: #{tpu_custom_call.1} parent=5 // pred_check_branch
        %590 = sbr.rel (%p588) target = $region64
      $region63: #{tpu_custom_call.1} parent=5 // pred_region
        %s591 = ssub.s32 %s18, 2
        // Predicated region
        $region65: #{tpu_custom_call.1} parent=63 // pred_check
          %p592 = pneg %p241
        $region66: #{tpu_custom_call.1} parent=63 // pred_check_branch
          %594 = sbr.rel (%p592) target = $region68
        $region67: #{tpu_custom_call.1} parent=63 // pred_region
          %s595 = sand.u32 %s226, 1
          %s596 = scalar_lea.sflag [#allocation3], %s595
          %s597 = sand.u32 %s226, 1
          %s598 = scalar_lea.vmem [#allocation2], %s597
          %600 = dma.done %s596, 16
        $region68: #{tpu_custom_call.1} parent=63 // pred_fallthru
          _
      $region64: #{tpu_custom_call.1} parent=5 // pred_fallthru
        _
    $region6: #{tpu_custom_call.1} parent=1 // loop_footer
      %s22 = sadd.s32 1, %s18
    $region7: #{tpu_custom_call.1} parent=1 // loop_footer_branch
      %17 = sbr.rel target = $region3
    $region8: #{tpu_custom_call.1} parent=1 // loop_exit
      _
    %601 = vsyncpa [#allocation3], 1
    %s602 = scalar_lea.sflag [#allocation3], 1
    %603 = vsyncpa %s602, 1

</llo_original>
